<compile_context>
chip_gen: v7x
topology: tpu7x:2x2x1
jax: 0.10.0
libtpu: 0.0.40
codegen_flags: <defaults>
</compile_context>

<pallas_src>
import functools

import jax
import jax.numpy as jnp
from jax import lax
from jax.experimental import pallas as pl
from jax.experimental.pallas import tpu as pltpu


def _round_up(v, m):
    return ((v + m - 1) // m) * m


def _gct_kernel(x_ref, alpha_ref, gamma_ref, beta_ref, o_ref, *, epsilon):
    # x_ref block: (TB, C, HWp); params: (1, C, 1)
    x = x_ref[...].astype(jnp.float32)                  # (TB, C, HWp)
    alpha = alpha_ref[...].astype(jnp.float32)          # (1, C, 1)
    gamma = gamma_ref[...].astype(jnp.float32)          # (1, C, 1)
    beta = beta_ref[...].astype(jnp.float32)            # (1, C, 1)

    # Spatial L2 embedding (lane reduction); zero-padded lanes contribute 0.
    x2_sum = jnp.sum(x * x, axis=-1, keepdims=True)     # (TB, C, 1)
    embedding = jnp.sqrt(x2_sum + epsilon) * alpha      # (TB, C, 1)

    # Channel-wise normalization (sublane reduction over the real C).
    mean_e2 = jnp.mean(embedding * embedding, axis=1, keepdims=True)  # (TB,1,1)
    norm = gamma * lax.rsqrt(mean_e2 + epsilon)          # (TB, C, 1)

    # Gate and apply (broadcast over lanes).
    gate = 1.0 + jnp.tanh(embedding * norm + beta)       # (TB, C, 1)
    o_ref[...] = (x * gate).astype(o_ref.dtype)


def _choose_batch_tile(n, c, hwp, itemsize, target_block_bytes):
    """Pick how many images to process per grid step (VMEM-budget aware)."""
    # In VMEM, the sublane (second-to-last) dim of each (C, HWp) slab is padded
    # to 8 rows for f32 (16 for 16-bit dtypes); account for that when sizing.
    sublane = max(1, 4 // itemsize) * 8
    c_pad = _round_up(c, sublane)
    bytes_per_image = c_pad * hwp * itemsize
    cap = max(1, min(n, target_block_bytes // bytes_per_image))
    # Prefer a divisor of n (no batch padding); fall back to the cap (with
    # batch padding) if the best divisor wastes too much of the tile budget.
    best_div = 1
    for t in range(cap, 0, -1):
        if n % t == 0:
            best_div = t
            break
    if best_div >= max(1, cap // 2):
        return best_div
    return cap


def gct_forward(x_nchw, alpha, gamma, beta, epsilon=1e-5,
                target_block_bytes=3 << 20):
    """x_nchw: (N, C, H, W); alpha/gamma/beta: (1, C, 1, 1). Returns (N, C, H, W)."""
    N, C, H, W = x_nchw.shape
    HW = H * W
    HWp = _round_up(HW, 128)
    itemsize = jnp.dtype(x_nchw.dtype).itemsize

    x = x_nchw.reshape(N, C, HW)
    if HWp != HW:
        # Zero padding keeps the spatial L2 sum exact and makes the lane dim a
        # multiple of 128 (dense, unmasked vector stores).
        x = jnp.pad(x, ((0, 0), (0, 0), (0, HWp - HW)))

    TB = _choose_batch_tile(N, C, HWp, itemsize, target_block_bytes)
    Np = _round_up(N, TB)
    if Np != N:
        # Zero-padded images are mathematically harmless (finite gate) and are
        # sliced off before returning.
        x = jnp.pad(x, ((0, Np - N), (0, 0), (0, 0)))

    a = alpha.reshape(1, C, 1)
    g = gamma.reshape(1, C, 1)
    b = beta.reshape(1, C, 1)

    kernel = functools.partial(_gct_kernel, epsilon=epsilon)

    out = pl.pallas_call(
        kernel,
        out_shape=jax.ShapeDtypeStruct((Np, C, HWp), x_nchw.dtype),
        grid_spec=pltpu.PrefetchScalarGridSpec(
            num_scalar_prefetch=0,
            grid=(Np // TB,),
            in_specs=[
                pl.BlockSpec((TB, C, HWp), lambda n: (n, 0, 0)),
                pl.BlockSpec((1, C, 1), lambda n: (0, 0, 0)),
                pl.BlockSpec((1, C, 1), lambda n: (0, 0, 0)),
                pl.BlockSpec((1, C, 1), lambda n: (0, 0, 0)),
            ],
            out_specs=pl.BlockSpec((TB, C, HWp), lambda n: (n, 0, 0)),
        ),
        compiler_params=pltpu.CompilerParams(
            dimension_semantics=("parallel",),
            vmem_limit_bytes=32 * 1024 * 1024,
        ),
    )(x, a, g, b)

    return out[:N, :, :HW].reshape(N, C, H, W)


def gct_reference(x, alpha, gamma, beta, epsilon=1e-5):
    # Pure-JAX reference mirroring the PyTorch forward.
    embedding = jnp.sqrt(jnp.sum(x * x, axis=(2, 3), keepdims=True) + epsilon) * alpha
    norm = gamma / jnp.sqrt(jnp.mean(embedding * embedding, axis=1, keepdims=True) + epsilon)
    gate = 1.0 + jnp.tanh(embedding * norm + beta)
    return x * gate


if __name__ == "__main__":
    # Case 1: lane-aligned spatial dim (16*16 = 256), C=4.
    N, C, H, W = 2, 4, 16, 16
    k0, k1, k2, k3 = jax.random.split(jax.random.PRNGKey(0), 4)
    x = jax.random.normal(k0, (N, C, H, W), dtype=jnp.float32)
    # nn.Parameter defaults (alpha=1, gamma=0, beta=0) perturbed deterministically
    # so the gate is actually exercised.
    alpha = jnp.ones((1, C, 1, 1), jnp.float32) \
        + 0.1 * jax.random.normal(k1, (1, C, 1, 1), dtype=jnp.float32)
    gamma = 0.1 * jax.random.normal(k2, (1, C, 1, 1), dtype=jnp.float32)
    beta = 0.1 * jax.random.normal(k3, (1, C, 1, 1), dtype=jnp.float32)

    out = jax.block_until_ready(gct_forward(x, alpha, gamma, beta))
    ref = gct_reference(x, alpha, gamma, beta)
    assert out.shape == (N, C, H, W)
    assert jnp.allclose(out, ref, atol=1e-5, rtol=1e-5), "mismatch vs reference (case 1)"

    # Case 2: non-lane-aligned H*W (7*7 = 49 -> padded to 128) and odd C.
    N2, C2, H2, W2 = 3, 5, 7, 7
    k4, k5, k6, k7 = jax.random.split(jax.random.PRNGKey(1), 4)
    x2 = jax.random.normal(k4, (N2, C2, H2, W2), dtype=jnp.float32)
    a2 = jnp.ones((1, C2, 1, 1), jnp.float32) \
        + 0.1 * jax.random.normal(k5, (1, C2, 1, 1), dtype=jnp.float32)
    g2 = 0.1 * jax.random.normal(k6, (1, C2, 1, 1), dtype=jnp.float32)
    b2 = 0.1 * jax.random.normal(k7, (1, C2, 1, 1), dtype=jnp.float32)

    out2 = jax.block_until_ready(gct_forward(x2, a2, g2, b2))
    ref2 = gct_reference(x2, a2, g2, b2)
    assert out2.shape == (N2, C2, H2, W2)
    assert jnp.allclose(out2, ref2, atol=1e-5, rtol=1e-5), "mismatch vs reference (case 2)"

    print("KERNEL_OK")
</pallas_src>

<mosaic_0001>
module attributes {stable_mosaic.version = 11 : i64} {
  func.func @_gct_kernel(%arg0: i32, %arg1: memref<2x4x256xf32, #tpu.memory_space<vmem>>, %arg2: memref<1x4x1xf32, #tpu.memory_space<vmem>>, %arg3: memref<1x4x1xf32, #tpu.memory_space<vmem>>, %arg4: memref<1x4x1xf32, #tpu.memory_space<vmem>>, %arg5: memref<2x4x256xf32, #tpu.memory_space<vmem>>) attributes {dimension_semantics = [#tpu.dimension_semantics<parallel>], iteration_bounds = array<i64: 1>, scalar_prefetch = 0 : i64, scratch_operands = 0 : i64, tpu.core_type = #tpu.core_type<tc>, window_params = [{transform_indices = @transform_0, window_bounds = array<i64: 2, 4, 256>}, {pipeline_mode = #tpu.pipeline_mode<synchronous>, transform_indices = @transform_1, window_bounds = array<i64: 1, 4, 1>}, {pipeline_mode = #tpu.pipeline_mode<synchronous>, transform_indices = @transform_2, window_bounds = array<i64: 1, 4, 1>}, {pipeline_mode = #tpu.pipeline_mode<synchronous>, transform_indices = @transform_3, window_bounds = array<i64: 1, 4, 1>}, {transform_indices = @transform_4, window_bounds = array<i64: 2, 4, 256>}]} {
    %c0 = arith.constant 0 : index
    %c0_0 = arith.constant 0 : index
    %c0_1 = arith.constant 0 : index
    %0 = vector.load %arg1[%c0, %c0_0, %c0_1] : memref<2x4x256xf32, #tpu.memory_space<vmem>>, vector<2x4x256xf32>
    %c0_2 = arith.constant 0 : index
    %c0_3 = arith.constant 0 : index
    %c0_4 = arith.constant 0 : index
    %1 = vector.load %arg2[%c0_2, %c0_3, %c0_4] : memref<1x4x1xf32, #tpu.memory_space<vmem>>, vector<1x4x1xf32>
    %c0_5 = arith.constant 0 : index
    %c0_6 = arith.constant 0 : index
    %c0_7 = arith.constant 0 : index
    %2 = vector.load %arg3[%c0_5, %c0_6, %c0_7] : memref<1x4x1xf32, #tpu.memory_space<vmem>>, vector<1x4x1xf32>
    %c0_8 = arith.constant 0 : index
    %c0_9 = arith.constant 0 : index
    %c0_10 = arith.constant 0 : index
    %3 = vector.load %arg4[%c0_8, %c0_9, %c0_10] : memref<1x4x1xf32, #tpu.memory_space<vmem>>, vector<1x4x1xf32>
    %4 = arith.mulf %0, %0 : vector<2x4x256xf32>
    %cst = arith.constant dense<0.000000e+00> : vector<2x4xf32>
    %5 = vector.multi_reduction <add>, %4, %cst [2] : vector<2x4x256xf32> to vector<2x4xf32>
    %6 = vector.shape_cast %5 : vector<2x4xf32> to vector<2x4x1xf32>
    %cst_11 = arith.constant 9.99999974E-6 : f32
    %7 = vector.broadcast %cst_11 : f32 to vector<2x4x1xf32>
    %8 = arith.addf %6, %7 : vector<2x4x1xf32>
    %9 = math.sqrt %8 : vector<2x4x1xf32>
    %10 = vector.broadcast %1 : vector<1x4x1xf32> to vector<2x4x1xf32>
    %11 = arith.mulf %9, %10 : vector<2x4x1xf32>
    %12 = arith.mulf %11, %11 : vector<2x4x1xf32>
    %cst_12 = arith.constant dense<0.000000e+00> : vector<2x1xf32>
    %13 = vector.multi_reduction <add>, %12, %cst_12 [1] : vector<2x4x1xf32> to vector<2x1xf32>
    %14 = vector.shape_cast %13 : vector<2x1xf32> to vector<2x1x1xf32>
    %cst_13 = arith.constant 4.000000e+00 : f32
    %15 = vector.broadcast %cst_13 : f32 to vector<2x1x1xf32>
    %16 = arith.divf %14, %15 : vector<2x1x1xf32>
    %cst_14 = arith.constant 9.99999974E-6 : f32
    %17 = vector.broadcast %cst_14 : f32 to vector<2x1x1xf32>
    %18 = arith.addf %16, %17 : vector<2x1x1xf32>
    %19 = math.rsqrt %18 : vector<2x1x1xf32>
    %20 = vector.broadcast %2 : vector<1x4x1xf32> to vector<2x4x1xf32>
    %21 = vector.broadcast %19 : vector<2x1x1xf32> to vector<2x4x1xf32>
    %22 = arith.mulf %20, %21 : vector<2x4x1xf32>
    %23 = arith.mulf %11, %22 : vector<2x4x1xf32>
    %24 = vector.broadcast %3 : vector<1x4x1xf32> to vector<2x4x1xf32>
    %25 = arith.addf %23, %24 : vector<2x4x1xf32>
    %26 = math.tanh %25 : vector<2x4x1xf32>
    %cst_15 = arith.constant 1.000000e+00 : f32
    %27 = vector.broadcast %cst_15 : f32 to vector<2x4x1xf32>
    %28 = arith.addf %27, %26 : vector<2x4x1xf32>
    %29 = vector.broadcast %28 : vector<2x4x1xf32> to vector<2x4x256xf32>
    %30 = arith.mulf %0, %29 : vector<2x4x256xf32>
    %c0_16 = arith.constant 0 : index
    %c0_17 = arith.constant 0 : index
    %c0_18 = arith.constant 0 : index
    %31 = vector.load %arg5[%c0_16, %c0_17, %c0_18] : memref<2x4x256xf32, #tpu.memory_space<vmem>>, vector<2x4x256xf32>
    tpu.vector_store %arg5[%c0_16, %c0_17, %c0_18], %30 {strides = array<i32>} : memref<2x4x256xf32, #tpu.memory_space<vmem>>, vector<2x4x256xf32>,
    return
  }
  func.func @transform_0(%arg0: i32) -> (i32, i32, i32) {
    %c0_i32 = arith.constant 0 : i32
    %c0_i32_0 = arith.constant 0 : i32
    %c0_i32_1 = arith.constant 0 : i32
    return %arg0, %c0_i32, %c0_i32_0 : i32, i32, i32
  }
  func.func @transform_1(%arg0: i32) -> (i32, i32, i32) {
    %c0_i32 = arith.constant 0 : i32
    %c0_i32_0 = arith.constant 0 : i32
    %c0_i32_1 = arith.constant 0 : i32
    %c0_i32_2 = arith.constant 0 : i32
    return %c0_i32, %c0_i32_0, %c0_i32_1 : i32, i32, i32
  }
  func.func @transform_2(%arg0: i32) -> (i32, i32, i32) {
    %c0_i32 = arith.constant 0 : i32
    %c0_i32_0 = arith.constant 0 : i32
    %c0_i32_1 = arith.constant 0 : i32
    %c0_i32_2 = arith.constant 0 : i32
    return %c0_i32, %c0_i32_0, %c0_i32_1 : i32, i32, i32
  }
  func.func @transform_3(%arg0: i32) -> (i32, i32, i32) {
    %c0_i32 = arith.constant 0 : i32
    %c0_i32_0 = arith.constant 0 : i32
    %c0_i32_1 = arith.constant 0 : i32
    %c0_i32_2 = arith.constant 0 : i32
    return %c0_i32, %c0_i32_0, %c0_i32_1 : i32, i32, i32
  }
  func.func @transform_4(%arg0: i32) -> (i32, i32, i32) {
    %c0_i32 = arith.constant 0 : i32
    %c0_i32_0 = arith.constant 0 : i32
    %c0_i32_1 = arith.constant 0 : i32
    return %arg0, %c0_i32, %c0_i32_0 : i32, i32, i32
  }
}

</mosaic_0001>

<llo_original>
// kernel: tpu_custom_call.1
$region0: #{tpu_custom_call.1}
  #allocation0 [shape = 'u32[]', space=smem, size = 0x4, offset = 0x4, fixed_abs, tag = 'smem constant byte address 0x4 - core index']
  #allocation1 [shape = 'u32[144,128]{1,0:T(1,128)}', space=vmem, size = 0x12000, scoped, tag = 'internal scratch']
  %s0 = inlined_call_operand.hbm [shape: f32[2,4,256], index: 0, kind: input, shape index: {}]
  %s1 = inlined_call_operand.vmem [shape: f32[1,4,1], index: 1, kind: input, shape index: {}]
  %s2 = inlined_call_operand.vmem [shape: f32[1,4,1], index: 2, kind: input, shape index: {}]
  %s3 = inlined_call_operand.vmem [shape: f32[1,4,1], index: 3, kind: input, shape index: {}]
  %s4 = inlined_call_operand.hbm [shape: f32[2,4,256], index: 4, kind: output, shape index: {}]
  %s5 = sld [smem:[#allocation0]]
  $region30: #{tpu_custom_call.1} parent=0
    _
  %s7 = ssub.s32 1, %s5
  %s8 = scalar_select 0, %s7, %s5
  $region1: #{tpu_custom_call.1} parent=0
    #allocation2 [shape = 'u8[8192]{0}', space=vmem, size = 0x2000, scoped, tag = 'input window, operand 0, single buffered']
    #allocation3 [shape = 's32[1]{0}', space=sflag, size = 0x4, scoped, tag = 'scoped memory for tpu_custom_call.1']
    #allocation4 [shape = 's32[1]{0}', space=sflag, size = 0x4, scoped, tag = 'scoped memory for tpu_custom_call.1']
    #allocation5 [shape = 'u8[8192]{0}', space=vmem, size = 0x2000, scoped, tag = 'output window, operand 0, single buffered']
    %9 = vsyncpa [#allocation3], 0
    %10 = vsyncpa [#allocation4], 0
    // Predicated region
    $region2: #{tpu_custom_call.1} parent=1 // pred_check
      _
    $region3: #{tpu_custom_call.1} parent=1 // pred_check_branch
      %12 = sbr.rel (0) target = $region5
    $region4: #{tpu_custom_call.1} parent=1 // pred_region
      %s14 = ssub.s32 256, 256
      %15 = vsyncadd [#allocation3], %s14
      %s16 = sshll.u32 [#allocation2], 4
      %s17 = int_to_ptr.vmem [resolvable:$true] %s16
      %22 = dma.hbm_to_vmem [thread:$0]  %s0, 256, %s17, [#allocation3], 128, 128, 8
    $region5: #{tpu_custom_call.1} parent=1 // pred_fallthru
      _
    // Predicated region
    $region6: #{tpu_custom_call.1} parent=1 // pred_check
      _
    $region7: #{tpu_custom_call.1} parent=1 // pred_check_branch
      %24 = sbr.rel (0) target = $region9
    $region8: #{tpu_custom_call.1} parent=1 // pred_region
      _
    $region9: #{tpu_custom_call.1} parent=1 // pred_fallthru
      _
    // Predicated region
    $region10: #{tpu_custom_call.1} parent=1 // pred_check
      _
    $region11: #{tpu_custom_call.1} parent=1 // pred_check_branch
      %26 = sbr.rel (0) target = $region13
    $region12: #{tpu_custom_call.1} parent=1 // pred_region
      _
    $region13: #{tpu_custom_call.1} parent=1 // pred_fallthru
      _
    // Predicated region
    $region14: #{tpu_custom_call.1} parent=1 // pred_check
      _
    $region15: #{tpu_custom_call.1} parent=1 // pred_check_branch
      %28 = sbr.rel (0) target = $region17
    $region16: #{tpu_custom_call.1} parent=1 // pred_region
      _
    $region17: #{tpu_custom_call.1} parent=1 // pred_fallthru
      _
    // Predicated region
    $region18: #{tpu_custom_call.1} parent=1 // pred_check
      _
    $region19: #{tpu_custom_call.1} parent=1 // pred_check_branch
      %30 = sbr.rel (0) target = $region21
    $region20: #{tpu_custom_call.1} parent=1 // pred_region
      %31 = dma.done [#allocation3], 256
    $region21: #{tpu_custom_call.1} parent=1 // pred_fallthru
      _
    %v32 = vld [vmem:[#allocation2] sm:$0xff]
    %v33 = vld [vmem:[#allocation2 + $0x8] sm:$0xff]
    %v34 = vld [vmem:[%s1] sm:$0xf]
    %v35 = vld [vmem:[%s2] sm:$0xf]
    %v36 = vld [vmem:[%s3] sm:$0xf]
    %v37 = vmul.f32 %v32, %v32
    %v38 = vmul.f32 %v33, %v33
    %v41 = vcombine.high %v37, %v37
    %v42 = vcombine.high %v38, %v38
    %vm45 = vcmask 1043456
    %v46 = vsel %vm45, %v37, 0.0
    %v47 = vsel %vm45, %v41, 0.0
    %v48 = vadd.f32 %v46, %v47
    %49 = vadd.xlane.f32.xlu0 %v48
    %v50 = vpop.xlane.xlu0 %49
    %v51 = vsel %vm45, %v38, 0.0
    %v52 = vsel %vm45, %v42, 0.0
    %v53 = vadd.f32 %v51, %v52
    %54 = vadd.xlane.f32.xlu0 %v53
    %v55 = vpop.xlane.xlu0 %54
    %v56 = vadd.f32 %v50, 1e-05
    %v57 = vadd.f32 %v55, 1e-05
    %v58 = vrsqrt.pop %v56
    %v59 = vmul.f32 %v56, %v58
    %vm60 = vcmp.eq.f32.partialorder %v56, inf
    %v61 = vsel %vm60, %v56, %v59
    %vm62 = vcmp.eq.f32.partialorder %v56, 0.0
    %v63 = vand.u32 %v56, 2147483648
    %v64 = vsel %vm62, %v63, %v61
    %v65 = vrsqrt.pop %v57
    %v66 = vmul.f32 %v57, %v65
    %vm67 = vcmp.eq.f32.partialorder %v57, inf
    %v68 = vsel %vm67, %v57, %v66
    %vm69 = vcmp.eq.f32.partialorder %v57, 0.0
    %v70 = vand.u32 %v57, 2147483648
    %v71 = vsel %vm69, %v70, %v68
    %v72 = vmul.f32 %v64, %v34
    %v73 = vmul.f32 %v71, %v34
    %v74 = vmul.f32 %v72, %v72
    %v75 = vmul.f32 %v73, %v73
    %vm76 = vcmask 3072
    %v77 = vsel %vm76, %v74, 0.0
    %v78 = vrot.slane %v77, 4
    %v79 = vadd.f32 %v77, %v78
    %v80 = vrot.slane %v79, 2
    %v81 = vadd.f32 %v79, %v80
    %v82 = vrot.slane %v81, 1
    %v83 = vadd.f32 %v81, %v82
    %v84 = vsel %vm76, %v75, 0.0
    %v85 = vrot.slane %v84, 4
    %v86 = vadd.f32 %v84, %v85
    %v87 = vrot.slane %v86, 2
    %v88 = vadd.f32 %v86, %v87
    %v89 = vrot.slane %v88, 1
    %v90 = vadd.f32 %v88, %v89
    %v91 = vrcp.pop 4.0
    %v92 = vmul.f32 %v83, %v91
    %v93 = vmul.f32 %v90, %v91
    %v94 = vadd.f32 %v92, 1e-05
    %v95 = vadd.f32 %v93, 1e-05
    %v96 = vrsqrt.pop %v94
    %v97 = vrsqrt.pop %v95
    %v98 = vmul.f32 %v35, %v96
    %v99 = vmul.f32 %v35, %v97
    %v100 = vmul.f32 %v72, %v98
    %v101 = vmul.f32 %v73, %v99
    %v102 = vadd.f32 %v100, %v36
    %v103 = vadd.f32 %v101, %v36
    %v104 = vtanh.pop %v102
    %v105 = vtanh.pop %v103
    %v106 = vadd.f32 %v104, 1.0
    %v107 = vadd.f32 %v105, 1.0
    %109 = vset.pattern.permute.xlu0 0
    %110 = vperm.xlu0 %109, %v106
    %v111 = vpop.permute.xlu0 %110
    %113 = vset.pattern.permute.xlu0 0
    %114 = vperm.xlu0 %113, %v107
    %v115 = vpop.permute.xlu0 %114
    %v117 = vunpack.c.l.s4 839922192
    %v118 = vunpack.c.0.s8 %v117
    %v119 = vlaneseq
    %v120 = vshrl.u32 %v119, 7
    %v121 = vsub.s32 %v118, %v120
    %v122 = vrot.slane %v111, %v121
    %v124 = vunpack.c.l.s4 839922192
    %v125 = vunpack.c.0.s8 %v124
    %v126 = vlaneseq
    %v127 = vshrl.u32 %v126, 7
    %v128 = vsub.s32 %v125, %v127
    %v129 = vrot.slane %v115, %v128
    %v132 = vmul.f32 %v32, %v122
    %v133 = vmul.f32 %v33, %v129
    %134 = vst [vmem:[#allocation5] sm:$0xff] %v132
    %135 = vst [vmem:[#allocation5 + $0x8] sm:$0xff] %v133
    // Predicated region
    $region22: #{tpu_custom_call.1} parent=1 // pred_check
      _
    $region23: #{tpu_custom_call.1} parent=1 // pred_check_branch
      %137 = sbr.rel (0) target = $region25
    $region24: #{tpu_custom_call.1} parent=1 // pred_region
      %s139 = ssub.s32 256, 256
      %140 = vsyncadd [#allocation4], %s139
      %s141 = sshll.u32 [#allocation5], 4
      %s142 = int_to_ptr.vmem [resolvable:$true] %s141
      %147 = dma.vmem_to_hbm [thread:$0]  %s142, 256, %s4, [#allocation4], 128, 128, 8
    $region25: #{tpu_custom_call.1} parent=1 // pred_fallthru
      _
    // Predicated region
    $region26: #{tpu_custom_call.1} parent=1 // pred_check
      _
    $region27: #{tpu_custom_call.1} parent=1 // pred_check_branch
      %149 = sbr.rel (0) target = $region29
    $region28: #{tpu_custom_call.1} parent=1 // pred_region
      %150 = dma.done [#allocation4], 256
    $region29: #{tpu_custom_call.1} parent=1 // pred_fallthru
      _
    %151 = vsyncpa [#allocation3], 1
    %152 = vsyncpa [#allocation4], 1

</llo_original>
